<compile_context>
chip_gen: v6e
topology: v6e:2x2x1
jax: 0.10.0
libtpu: 0.0.40
codegen_flags: <defaults>
</compile_context>

<pallas_src>
import jax
import jax.numpy as jnp
from jax.experimental import pallas as pl
from jax.experimental.pallas import tpu as pltpu

_MiB = 1024 * 1024
_LANE = 128


def _round_up(v, m):
    return (v + m - 1) // m * m


def _vmem_capacity_bytes():
    """Per-TensorCore VMEM capacity; conservative fallback if the query fails."""
    try:
        cap = getattr(pltpu.get_tpu_info(), "vmem_capacity_bytes", None)
        if cap:
            return int(cap)
    except Exception:
        pass
    return 64 * _MiB  # v7x per-TC size; safe lower bound for v5e/v6e too


def _laplacian_kernel(w_ref, x_ref, out_ref):
    # w_ref:   (3, 3, L)   per-plane 3x3 taps, planes on the lane axis
    # x_ref:   (H, W, L)   L input planes, planes on the lane axis
    # out_ref: (1, 8, 128) this block's partial sum of |conv| (scalar broadcast)
    H, W, L = x_ref.shape
    Ho, Wo = H - 2, W - 2

    w = w_ref[...].astype(jnp.float32)  # (3, 3, L), tiny

    # Three W-shifted windows, each loaded exactly once and kept in the
    # input's native dtype (the f32 cast happens inside the tap multiply, so
    # bf16 inputs don't pay a doubled window copy).  ky shifts below are free
    # leading-axis slices of these.
    # (Alternative: pltpu.roll(x, -kx, axis=1) + a 2-column edge mask would
    #  move the kx shift onto the idle XLU and avoid the misaligned copies.)
    x0 = x_ref[:, 0:Wo, :]
    x1 = x_ref[:, 1:1 + Wo, :]
    x2 = x_ref[:, 2:2 + Wo, :]

    def tap(ky, kx, win):
        # (1, 1, L) lane-dense tap * (Ho, Wo, L) window -> f32 product
        return w[ky:ky + 1, kx:kx + 1, :] * win[ky:ky + Ho, :, :]

    # Whole stencil + abs + reduction as a single fused expression: no staged
    # accumulator array -> no 9x read-modify-write VMEM pass; one cross-lane
    # reduction and one lane-dense store per grid step.
    conv = (tap(0, 0, x0) + tap(0, 1, x1) + tap(0, 2, x2)
            + tap(1, 0, x0) + tap(1, 1, x1) + tap(1, 2, x2)
            + tap(2, 0, x0) + tap(2, 1, x1) + tap(2, 2, x2))

    out_ref[...] = jnp.full((1, 8, 128), jnp.sum(jnp.abs(conv)), jnp.float32)


@jax.jit
def laplacian_loss(x, weights):
    """x: (N, C, H, W), weights: (C, 3, 3) -> scalar f32 = |depthwise conv|.mean().

    Matches LaplacianLoss(padd=False): 3x3 valid depthwise conv (groups=C,
    no bias) followed by .abs().mean().
    """
    # TODO(synk): the padd=True (ReplicationPad2d(1)) branch of the module is
    # not implemented; only the module-default valid conv is covered.
    N, C, H, W = x.shape
    assert H > 2 and W > 2, "valid 3x3 conv needs H, W > 2"
    P = N * C
    Ho, Wo = H - 2, W - 2

    # ---- generation-aware block sizing -------------------------------------
    vmem_cap = _vmem_capacity_bytes()
    if vmem_cap >= 96 * _MiB:          # v5e / v6e: 128 MiB VMEM per core
        x_block_budget = 6 * _MiB
        vmem_limit = 80 * _MiB
    else:                              # v7x: 64 MiB VMEM per core
        x_block_budget = 3 * _MiB
        vmem_limit = 44 * _MiB

    # f32-sized estimate (products/sums accumulate in f32 regardless of input
    # dtype); per-step working set is ~7x one x block (double-buffered input +
    # 3 windows + compiler temporaries), which stays well inside vmem_limit.
    bytes_per_lane = H * W * 4
    if _LANE * bytes_per_lane > x_block_budget:
        # TODO(synk): add an H-tiled variant for very large spatial planes.
        raise NotImplementedError(
            f"spatial plane {H}x{W} too large for a single 128-lane VMEM block")

    # ---- balanced lane-block / grid selection -------------------------------
    P128 = _round_up(P, _LANE)
    max_lanes = max(_LANE, (x_block_budget // bytes_per_lane) // _LANE * _LANE)
    G = pl.cdiv(P128, max_lanes)
    if G > 1:
        G = _round_up(G, 2)            # both v7x TensorCores get work
    lane_blk = _round_up(pl.cdiv(P128, G), _LANE)
    G = pl.cdiv(P128, lane_blk)        # re-derive after rounding lane_blk
    P_pad = G * lane_blk               # avoids the old near-2x padding blowup

    # ---- planes-last (lane-dense) repack ------------------------------------
    # allow_input_fusion below lets XLA fuse this transpose/pad chain into the
    # pallas-call operand instead of doing a separate HBM round trip.
    # TODO(synk): add a native-layout (P, H, W) path for W >= 128 images so no
    # repack is needed at all.
    xp = jnp.transpose(x.reshape(P, H, W), (1, 2, 0))            # (H, W, P)
    wp = jnp.transpose(jnp.tile(weights, (N, 1, 1)), (1, 2, 0))  # (3, 3, P)
    if P_pad != P:
        # Zero planes x zero taps contribute |0| = 0 to the partial sums.
        xp = jnp.pad(xp, ((0, 0), (0, 0), (0, P_pad - P)))
        wp = jnp.pad(wp, ((0, 0), (0, 0), (0, P_pad - P)))

    partials = pl.pallas_call(
        _laplacian_kernel,
        out_shape=jax.ShapeDtypeStruct((G, 8, 128), jnp.float32),
        grid_spec=pltpu.PrefetchScalarGridSpec(
            num_scalar_prefetch=0,
            grid=(G,),
            in_specs=[
                # per-plane taps: one small lane-dense block per grid step
                pl.BlockSpec((3, 3, lane_blk), lambda g: (0, 0, g)),
                # lane_blk full (H, W) planes per grid step.
                # (If an xprof/bundle check shows exposed DMA on v7x, add
                #  pipeline_mode=pl.Buffered(3) here.)
                pl.BlockSpec((H, W, lane_blk), lambda g: (0, 0, g)),
            ],
            # independent lane-dense per-block partial sums -> parallel axis
            out_specs=pl.BlockSpec((1, 8, 128), lambda g: (g, 0, 0)),
        ),
        compiler_params=pltpu.CompilerParams(
            dimension_semantics=("parallel",),
            vmem_limit_bytes=vmem_limit,
            allow_input_fusion=[True, True],
        ),
    )(wp, xp)

    total = jnp.sum(partials[:, 0, 0])
    return total / jnp.float32(P * Ho * Wo)


def _reference_loss(x, weights):
    """Pure-JAX reference (same math as the PyTorch module, padd=False)."""
    N, C, H, W = x.shape
    Ho, Wo = H - 2, W - 2
    out = jnp.zeros((N, C, Ho, Wo), jnp.float32)
    for ky in range(3):
        for kx in range(3):
            out = out + weights[None, :, ky, kx, None, None] * \
                x[:, :, ky:ky + Ho, kx:kx + Wo]
    return jnp.mean(jnp.abs(out))


if __name__ == "__main__":
    key = jax.random.PRNGKey(0)
    N, C, H, W = 2, 4, 16, 16

    x = jax.random.normal(key, (N, C, H, W), dtype=jnp.float32)

    # Deterministic weight init: every channel gets the same Laplacian filter,
    # exactly as LaplacianLoss.weights_init does.
    lap = jnp.array([[1.0, 4.0, 1.0],
                     [4.0, -20.0, 4.0],
                     [1.0, 4.0, 1.0]], dtype=jnp.float32)
    weights = jnp.tile(lap[None, :, :], (C, 1, 1))

    loss = jax.block_until_ready(laplacian_loss(x, weights))
    ref = jax.block_until_ready(_reference_loss(x, weights))

    assert jnp.allclose(loss, ref, rtol=2e-5, atol=2e-5), (loss, ref)
    print("KERNEL_OK")
</pallas_src>

<mosaic_0001>
module attributes {stable_mosaic.version = 11 : i64} {
  func.func @_laplacian_kernel(%arg0: i32, %arg1: memref<3x3x128xf32, #tpu.memory_space<vmem>>, %arg2: memref<16x16x128xf32, #tpu.memory_space<vmem>>, %arg3: memref<1x8x128xf32, #tpu.memory_space<vmem>>) attributes {dimension_semantics = [#tpu.dimension_semantics<parallel>], iteration_bounds = array<i64: 1>, scalar_prefetch = 0 : i64, scratch_operands = 0 : i64, tpu.core_type = #tpu.core_type<tc>, window_params = [{transform_indices = @transform_0, window_bounds = array<i64: 3, 3, 128>}, {transform_indices = @transform_1, window_bounds = array<i64: 16, 16, 128>}, {transform_indices = @transform_2, window_bounds = array<i64: 1, 8, 128>}]} {
    %c0 = arith.constant 0 : index
    %c0_0 = arith.constant 0 : index
    %c0_1 = arith.constant 0 : index
    %0 = vector.load %arg1[%c0, %c0_0, %c0_1] : memref<3x3x128xf32, #tpu.memory_space<vmem>>, vector<3x3x128xf32>
    %c0_2 = arith.constant 0 : index
    %c0_3 = arith.constant 0 : index
    %c0_4 = arith.constant 0 : index
    %1 = vector.load %arg2[%c0_2, %c0_3, %c0_4] : memref<16x16x128xf32, #tpu.memory_space<vmem>>, vector<16x14x128xf32>
    %c0_5 = arith.constant 0 : index
    %c1 = arith.constant 1 : index
    %c0_6 = arith.constant 0 : index
    %2 = vector.load %arg2[%c0_5, %c1, %c0_6] : memref<16x16x128xf32, #tpu.memory_space<vmem>>, vector<16x14x128xf32>
    %c0_7 = arith.constant 0 : index
    %c2 = arith.constant 2 : index
    %c0_8 = arith.constant 0 : index
    %3 = vector.load %arg2[%c0_7, %c2, %c0_8] : memref<16x16x128xf32, #tpu.memory_space<vmem>>, vector<16x14x128xf32>
    %4 = vector.extract_strided_slice %0 {offsets = [0, 0, 0], sizes = [1, 1, 128], strides = [1, 1, 1]} : vector<3x3x128xf32> to vector<1x1x128xf32>
    %5 = vector.extract_strided_slice %1 {offsets = [0, 0, 0], sizes = [14, 14, 128], strides = [1, 1, 1]} : vector<16x14x128xf32> to vector<14x14x128xf32>
    %6 = vector.broadcast %4 : vector<1x1x128xf32> to vector<14x14x128xf32>
    %7 = arith.mulf %6, %5 : vector<14x14x128xf32>
    %8 = vector.extract_strided_slice %0 {offsets = [0, 1, 0], sizes = [1, 1, 128], strides = [1, 1, 1]} : vector<3x3x128xf32> to vector<1x1x128xf32>
    %9 = vector.extract_strided_slice %2 {offsets = [0, 0, 0], sizes = [14, 14, 128], strides = [1, 1, 1]} : vector<16x14x128xf32> to vector<14x14x128xf32>
    %10 = vector.broadcast %8 : vector<1x1x128xf32> to vector<14x14x128xf32>
    %11 = arith.mulf %10, %9 : vector<14x14x128xf32>
    %12 = arith.addf %7, %11 : vector<14x14x128xf32>
    %13 = vector.extract_strided_slice %0 {offsets = [0, 2, 0], sizes = [1, 1, 128], strides = [1, 1, 1]} : vector<3x3x128xf32> to vector<1x1x128xf32>
    %14 = vector.extract_strided_slice %3 {offsets = [0, 0, 0], sizes = [14, 14, 128], strides = [1, 1, 1]} : vector<16x14x128xf32> to vector<14x14x128xf32>
    %15 = vector.broadcast %13 : vector<1x1x128xf32> to vector<14x14x128xf32>
    %16 = arith.mulf %15, %14 : vector<14x14x128xf32>
    %17 = arith.addf %12, %16 : vector<14x14x128xf32>
    %18 = vector.extract_strided_slice %0 {offsets = [1, 0, 0], sizes = [1, 1, 128], strides = [1, 1, 1]} : vector<3x3x128xf32> to vector<1x1x128xf32>
    %19 = vector.extract_strided_slice %1 {offsets = [1, 0, 0], sizes = [14, 14, 128], strides = [1, 1, 1]} : vector<16x14x128xf32> to vector<14x14x128xf32>
    %20 = vector.broadcast %18 : vector<1x1x128xf32> to vector<14x14x128xf32>
    %21 = arith.mulf %20, %19 : vector<14x14x128xf32>
    %22 = arith.addf %17, %21 : vector<14x14x128xf32>
    %23 = vector.extract_strided_slice %0 {offsets = [1, 1, 0], sizes = [1, 1, 128], strides = [1, 1, 1]} : vector<3x3x128xf32> to vector<1x1x128xf32>
    %24 = vector.extract_strided_slice %2 {offsets = [1, 0, 0], sizes = [14, 14, 128], strides = [1, 1, 1]} : vector<16x14x128xf32> to vector<14x14x128xf32>
    %25 = vector.broadcast %23 : vector<1x1x128xf32> to vector<14x14x128xf32>
    %26 = arith.mulf %25, %24 : vector<14x14x128xf32>
    %27 = arith.addf %22, %26 : vector<14x14x128xf32>
    %28 = vector.extract_strided_slice %0 {offsets = [1, 2, 0], sizes = [1, 1, 128], strides = [1, 1, 1]} : vector<3x3x128xf32> to vector<1x1x128xf32>
    %29 = vector.extract_strided_slice %3 {offsets = [1, 0, 0], sizes = [14, 14, 128], strides = [1, 1, 1]} : vector<16x14x128xf32> to vector<14x14x128xf32>
    %30 = vector.broadcast %28 : vector<1x1x128xf32> to vector<14x14x128xf32>
    %31 = arith.mulf %30, %29 : vector<14x14x128xf32>
    %32 = arith.addf %27, %31 : vector<14x14x128xf32>
    %33 = vector.extract_strided_slice %0 {offsets = [2, 0, 0], sizes = [1, 1, 128], strides = [1, 1, 1]} : vector<3x3x128xf32> to vector<1x1x128xf32>
    %34 = vector.extract_strided_slice %1 {offsets = [2, 0, 0], sizes = [14, 14, 128], strides = [1, 1, 1]} : vector<16x14x128xf32> to vector<14x14x128xf32>
    %35 = vector.broadcast %33 : vector<1x1x128xf32> to vector<14x14x128xf32>
    %36 = arith.mulf %35, %34 : vector<14x14x128xf32>
    %37 = arith.addf %32, %36 : vector<14x14x128xf32>
    %38 = vector.extract_strided_slice %0 {offsets = [2, 1, 0], sizes = [1, 1, 128], strides = [1, 1, 1]} : vector<3x3x128xf32> to vector<1x1x128xf32>
    %39 = vector.extract_strided_slice %2 {offsets = [2, 0, 0], sizes = [14, 14, 128], strides = [1, 1, 1]} : vector<16x14x128xf32> to vector<14x14x128xf32>
    %40 = vector.broadcast %38 : vector<1x1x128xf32> to vector<14x14x128xf32>
    %41 = arith.mulf %40, %39 : vector<14x14x128xf32>
    %42 = arith.addf %37, %41 : vector<14x14x128xf32>
    %43 = vector.extract_strided_slice %0 {offsets = [2, 2, 0], sizes = [1, 1, 128], strides = [1, 1, 1]} : vector<3x3x128xf32> to vector<1x1x128xf32>
    %44 = vector.extract_strided_slice %3 {offsets = [2, 0, 0], sizes = [14, 14, 128], strides = [1, 1, 1]} : vector<16x14x128xf32> to vector<14x14x128xf32>
    %45 = vector.broadcast %43 : vector<1x1x128xf32> to vector<14x14x128xf32>
    %46 = arith.mulf %45, %44 : vector<14x14x128xf32>
    %47 = arith.addf %42, %46 : vector<14x14x128xf32>
    %48 = math.absf %47 : vector<14x14x128xf32>
    %49 = vector.shape_cast %48 : vector<14x14x128xf32> to vector<1x14x14x128xf32>
    %cst = arith.constant dense<0.000000e+00> : vector<1xf32>
    %50 = vector.multi_reduction <add>, %49, %cst [1, 2, 3] : vector<1x14x14x128xf32> to vector<1xf32>
    %51 = vector.shape_cast %50 : vector<1xf32> to vector<1x1x1x1xf32>
    %52 = vector.extract %51[0, 0, 0, 0] : f32 from vector<1x1x1x1xf32>
    %53 = vector.broadcast %52 : f32 to vector<1x8x128xf32>
    %c0_9 = arith.constant 0 : index
    %c0_10 = arith.constant 0 : index
    %c0_11 = arith.constant 0 : index
    %54 = vector.load %arg3[%c0_9, %c0_10, %c0_11] : memref<1x8x128xf32, #tpu.memory_space<vmem>>, vector<1x8x128xf32>
    tpu.vector_store %arg3[%c0_9, %c0_10, %c0_11], %53 {strides = array<i32>} : memref<1x8x128xf32, #tpu.memory_space<vmem>>, vector<1x8x128xf32>,
    return
  }
  func.func @transform_0(%arg0: i32) -> (i32, i32, i32) {
    %c0_i32 = arith.constant 0 : i32
    %c0_i32_0 = arith.constant 0 : i32
    %c0_i32_1 = arith.constant 0 : i32
    return %c0_i32, %c0_i32_0, %arg0 : i32, i32, i32
  }
  func.func @transform_1(%arg0: i32) -> (i32, i32, i32) {
    %c0_i32 = arith.constant 0 : i32
    %c0_i32_0 = arith.constant 0 : i32
    %c0_i32_1 = arith.constant 0 : i32
    return %c0_i32, %c0_i32_0, %arg0 : i32, i32, i32
  }
  func.func @transform_2(%arg0: i32) -> (i32, i32, i32) {
    %c0_i32 = arith.constant 0 : i32
    %c0_i32_0 = arith.constant 0 : i32
    %c0_i32_1 = arith.constant 0 : i32
    return %arg0, %c0_i32, %c0_i32_0 : i32, i32, i32
  }
}

</mosaic_0001>

<llo_original>
// kernel: tile.9
$region0: #{tile.9}
  %s0 = inlined_call_operand.vmem [shape: f32[2,4,3,3], index: 0, kind: input, shape index: {}]
  %s1 = inlined_call_operand.vmem [shape: f32[8,3,3], index: 1, kind: output, shape index: {}]
  $region1: #{tile.9} parent=0
    #allocation0 [shape = 'u8[12288]{0}', space=vmem, size = 0x3000, scoped, tag = 'scoped mem for output reshape']
    #allocation1 [shape = 'u8[36864]{0}', space=vmem, size = 0x9000, scoped, tag = 'scoped mem for input reshape']
    %s3 = sshll.u32 1, 2
    %s4 = ssub.s32 %s3, 1
    %s5 = smul.addr 2, 8
    %s6 = scalar_lea.vmem %s0, %s5
    %v7 = vld [vmem:[%s6] sm:%s4]
    %s8 = scalar_lea.vmem [#allocation1], 64
    %9 = vst [vmem:[%s8] sm:%s4] %v7
    %s10 = smul.addr 2, 7
    %s11 = scalar_lea.vmem %s0, %s10
    %v12 = vld [vmem:[%s11] sm:%s4]
    %s13 = scalar_lea.vmem [#allocation1], 56
    %14 = vst [vmem:[%s13] sm:%s4] %v12
    %s15 = smul.addr 2, 6
    %s16 = scalar_lea.vmem %s0, %s15
    %v17 = vld [vmem:[%s16] sm:%s4]
    %s18 = scalar_lea.vmem [#allocation1], 48
    %19 = vst [vmem:[%s18] sm:%s4] %v17
    %s20 = smul.addr 2, 5
    %s21 = scalar_lea.vmem %s0, %s20
    %v22 = vld [vmem:[%s21] sm:%s4]
    %s23 = scalar_lea.vmem [#allocation1], 40
    %24 = vst [vmem:[%s23] sm:%s4] %v22
    %s25 = smul.addr 2, 4
    %s26 = scalar_lea.vmem %s0, %s25
    %v27 = vld [vmem:[%s26] sm:%s4]
    %s28 = scalar_lea.vmem [#allocation1], 32
    %29 = vst [vmem:[%s28] sm:%s4] %v27
    %s30 = smul.addr 2, 3
    %s31 = scalar_lea.vmem %s0, %s30
    %v32 = vld [vmem:[%s31] sm:%s4]
    %s33 = scalar_lea.vmem [#allocation1], 24
    %34 = vst [vmem:[%s33] sm:%s4] %v32
    %s35 = smul.addr 2, 2
    %s36 = scalar_lea.vmem %s0, %s35
    %v37 = vld [vmem:[%s36] sm:%s4]
    %s38 = scalar_lea.vmem [#allocation1], 16
    %39 = vst [vmem:[%s38] sm:%s4] %v37
    %s40 = scalar_lea.vmem %s0, 2
    %v41 = vld [vmem:[%s40] sm:%s4]
    %s42 = scalar_lea.vmem [#allocation1], 8
    %43 = vst [vmem:[%s42] sm:%s4] %v41
    %v44 = vld [vmem:[%s0] sm:%s4]
    %45 = vst [vmem:[#allocation1] sm:%s4] %v44
    %v46 = vld [vmem:[#allocation1] ss:$8 sm:$0xf]
    %v47 = vld [vmem:[#allocation1] ss:$8 sm:$0xf0]
    %vm48 = vcmask 1047556
    %v49 = vsel %vm48, %v47, %v46
    %vm50 = vcmask 31744
    %51 = vst.msk [vmem:[#allocation0] sm:$0x7] %vm50, %v49
    %s52 = scalar_lea.vmem [#allocation0], 5
    %53 = vst.msk [vmem:[%s52] sm:$0x38] %vm50, %v49
    %s54 = scalar_lea.vmem [#allocation0], 10
    %55 = vst.msk [vmem:[%s54] sm:$0xc0] %vm50, %v49
    %s56 = scalar_lea.vmem [#allocation1], 64
    %v57 = vld [vmem:[%s56] sm:$0x1]
    %vm58 = vcmask 31744
    %s59 = scalar_lea.vmem [#allocation0], 18
    %60 = vst.msk [vmem:[%s59] sm:$0x1] %vm58, %v57
    %s61 = scalar_lea.vmem [#allocation1], 1
    %v62 = vld [vmem:[%s61] ss:$8 sm:$0xf]
    %s63 = scalar_lea.vmem [#allocation1], 1
    %v64 = vld [vmem:[%s63] ss:$8 sm:$0xf0]
    %vm65 = vcmask 1047556
    %v66 = vsel %vm65, %v64, %v62
    %67 = vrot.lane.b32.xlu0 %v66, 4
    %v68 = vpop.permute.xlu0 %67
    %vm69 = vcmask 64544
    %70 = vst.msk [vmem:[#allocation0] sm:$0x7] %vm69, %v68
    %s71 = scalar_lea.vmem [#allocation0], 5
    %72 = vst.msk [vmem:[%s71] sm:$0x38] %vm69, %v68
    %s73 = scalar_lea.vmem [#allocation0], 10
    %74 = vst.msk [vmem:[%s73] sm:$0xc0] %vm69, %v68
    %s75 = scalar_lea.vmem [#allocation1], 65
    %v76 = vld [vmem:[%s75] sm:$0x1]
    %77 = vrot.lane.b32.xlu0 %v76, 4
    %v78 = vpop.permute.xlu0 %77
    %vm79 = vcmask 64544
    %s80 = scalar_lea.vmem [#allocation0], 18
    %81 = vst.msk [vmem:[%s80] sm:$0x1] %vm79, %v78
    %s83 = sshll.u32 1, 4
    %s84 = ssub.s32 %s83, 1
    %v86 = vld [vmem:[#allocation0] sm:%s84]
    %s87 = sshll.u32 1, 4
    %s88 = ssub.s32 %s87, 1
    %89 = vst [vmem:[%s1] sm:%s88] %v86
    %s90 = scalar_lea.vmem [#allocation0], 8
    %v91 = vld [vmem:[%s90] sm:%s84]
    %s92 = sshll.u32 1, 4
    %s93 = ssub.s32 %s92, 1
    %s94 = scalar_lea.vmem %s1, 4
    %95 = vst [vmem:[%s94] sm:%s93] %v91
    %s96 = scalar_lea.vmem [#allocation0], 16
    %v97 = vld [vmem:[%s96] sm:%s84]
    %s98 = sshll.u32 1, 4
    %s99 = ssub.s32 %s98, 1
    %s100 = smul.addr 4, 2
    %s101 = scalar_lea.vmem %s1, %s100
    %102 = vst [vmem:[%s101] sm:%s99] %v97

// kernel: laplacian_loss.2
$region0: #{laplacian_loss.2}
  #allocation0 [shape = 'u32[]', space=smem, size = 0x4, offset = 0x4, fixed_abs, tag = 'smem constant byte address 0x4 - core index']
  #allocation1 [shape = 'u32[144,128]{1,0:T(1,128)}', space=vmem, size = 0x12000, scoped, tag = 'internal scratch']
  #allocation2 [shape = 'u32[2048]{0}', space=vmem, size = 0x2000, scoped, tag = 'scoped memory for laplacian_loss.2']
  #allocation3 [shape = 'u32[2048]{0}', space=vmem, size = 0x2000, scoped, tag = 'scoped memory for laplacian_loss.2']
  #allocation4 [shape = 'u32[2048]{0}', space=vmem, size = 0x2000, scoped, tag = 'scoped memory for laplacian_loss.2']
  #allocation5 [shape = 'u32[2048]{0}', space=vmem, size = 0x2000, scoped, tag = 'scoped memory for laplacian_loss.2']
  #allocation6 [shape = 'u32[2048]{0}', space=vmem, size = 0x2000, scoped, tag = 'scoped memory for laplacian_loss.2']
  #allocation7 [shape = 'u32[2048]{0}', space=vmem, size = 0x2000, scoped, tag = 'scoped memory for laplacian_loss.2']
  #allocation8 [shape = 'u32[2048]{0}', space=vmem, size = 0x2000, scoped, tag = 'scoped memory for laplacian_loss.2']
  #allocation9 [shape = 'u32[2048]{0}', space=vmem, size = 0x2000, scoped, tag = 'scoped memory for laplacian_loss.2']
  #allocation10 [shape = 'u32[2048]{0}', space=vmem, size = 0x2000, scoped, tag = 'scoped memory for laplacian_loss.2']
  #allocation11 [shape = 'u32[2048]{0}', space=vmem, size = 0x2000, scoped, tag = 'scoped memory for laplacian_loss.2']
  %s0 = inlined_call_operand.vmem [shape: f32[16,16,8], index: 0, kind: input, shape index: {}]
  %s1 = inlined_call_operand.<no memory space> [shape: f32[], index: 1, kind: input, shape index: {}]
  %s2 = inlined_call_operand.vmem [shape: f32[3,3,8], index: 2, kind: input, shape index: {}]
  %s3 = inlined_call_operand.vmem [shape: f32[1,8,128], index: 3, kind: output, shape index: {}]
  %s4 = sld [smem:[#allocation0]]
  $region18: #{laplacian_loss.2} parent=0
    _
  %s6 = ssub.s32 1, %s4
  %s7 = scalar_select 0, %s6, %s4
  %v8 = vstv %s1
  %v9 = vstv %s1
  $region1: #{laplacian_loss.2} parent=0
    #allocation12 [shape = 'u8[6144]{0}', space=vmem, size = 0x1800, dematerialized = true, scoped, tag = 'FusionAdapter Buffer %fusion.2 = f32[3,3,128]{2,1,0:T(4,128)} fusion(%param_2.1, %param_1.3), kind=kLoop, calls=%fused_computation.2.clone, metadata={op_name="jit(laplacian_loss)/jit(_pad)/pad" stack_frame_id=13}']
    #allocation13 [shape = 'u8[131072]{0}', space=vmem, size = 0x20000, dematerialized = true, scoped, tag = 'FusionAdapter Buffer %fusion.1 = f32[16,16,128]{2,1,0:T(8,128)} fusion(%param_0.2, %param_1.3), kind=kLoop, calls=%fused_computation.1.clone, metadata={op_name="jit(laplacian_loss)/jit(_pad)/pad" stack_frame_id=12}']
    // Predicated region
    $region2: #{laplacian_loss.2} parent=1 // pred_check
      _
    $region3: #{laplacian_loss.2} parent=1 // pred_check_branch
      %11 = sbr.rel (0) target = $region5
    $region4: #{laplacian_loss.2} parent=1 // pred_region
      _
    $region5: #{laplacian_loss.2} parent=1 // pred_fallthru
      _
    // Predicated region
    $region6: #{laplacian_loss.2} parent=1 // pred_check
      _
    $region7: #{laplacian_loss.2} parent=1 // pred_check_branch
      %13 = sbr.rel (0) target = $region9
    $region8: #{laplacian_loss.2} parent=1 // pred_region
      _
    $region9: #{laplacian_loss.2} parent=1 // pred_fallthru
      _
    %v14 = vld [vmem:[%s2] sm:$0x7]
    %v15 = vlaneseq
    %v16 = vshrl.u32 %v15, 7
    %vm18 = vcmp.lt.s32.totalorder %v16, 3
    %v19 = vsel %vm18, %v14, %v8
    %v20 = vlaneseq
    %v21 = vand.u32 %v20, 127
    %vm23 = vcmp.lt.s32.totalorder %v21, 8
    %v24 = vsel %vm23, %v19, %v8
    %s26 = ssub.s32 16, 1
    %27 = vst [vmem:[#allocation12] sm:%s26] %v24
    %s28 = scalar_lea.vmem %s2, 4
    %v29 = vld [vmem:[%s28] sm:$0x7]
    %v30 = vlaneseq
    %v31 = vshrl.u32 %v30, 7
    %vm33 = vcmp.lt.s32.totalorder %v31, 3
    %v34 = vsel %vm33, %v29, %v8
    %v35 = vlaneseq
    %v36 = vand.u32 %v35, 127
    %vm38 = vcmp.lt.s32.totalorder %v36, 8
    %v39 = vsel %vm38, %v34, %v8
    %s40 = scalar_lea.vmem [#allocation12], 4
    %s42 = ssub.s32 16, 1
    %43 = vst [vmem:[%s40] sm:%s42] %v39
    %s44 = scalar_lea.vmem %s2, 8
    %v45 = vld [vmem:[%s44] sm:$0x7]
    %v46 = vlaneseq
    %v47 = vshrl.u32 %v46, 7
    %vm49 = vcmp.lt.s32.totalorder %v47, 3
    %v50 = vsel %vm49, %v45, %v8
    %v51 = vlaneseq
    %v52 = vand.u32 %v51, 127
    %vm54 = vcmp.lt.s32.totalorder %v52, 8
    %v55 = vsel %vm54, %v50, %v8
    %s56 = scalar_lea.vmem [#allocation12], 8
    %s58 = ssub.s32 16, 1
    %59 = vst [vmem:[%s56] sm:%s58] %v55
    %v60 = vld [vmem:[%s0] sm:$0xff]
    %v61 = vlaneseq
    %v62 = vand.u32 %v61, 127
    %vm64 = vcmp.lt.s32.totalorder %v62, 8
    %v65 = vsel %vm64, %v60, %v9
    %s67 = ssub.s32 256, 1
    %68 = vst [vmem:[#allocation13] sm:%s67] %v65
    %s69 = scalar_lea.vmem %s0, 8
    %v70 = vld [vmem:[%s69] sm:$0xff]
    %v71 = vlaneseq
    %v72 = vand.u32 %v71, 127
    %vm74 = vcmp.lt.s32.totalorder %v72, 8
    %v75 = vsel %vm74, %v70, %v9
    %s76 = scalar_lea.vmem [#allocation13], 8
    %s78 = ssub.s32 256, 1
    %79 = vst [vmem:[%s76] sm:%s78] %v75
    %s80 = scalar_lea.vmem %s0, 16
    %v81 = vld [vmem:[%s80] sm:$0xff]
    %v82 = vlaneseq
    %v83 = vand.u32 %v82, 127
    %vm85 = vcmp.lt.s32.totalorder %v83, 8
    %v86 = vsel %vm85, %v81, %v9
    %s87 = scalar_lea.vmem [#allocation13], 16
    %s89 = ssub.s32 256, 1
    %90 = vst [vmem:[%s87] sm:%s89] %v86
    %s91 = scalar_lea.vmem %s0, 24
    %v92 = vld [vmem:[%s91] sm:$0xff]
    %v93 = vlaneseq
    %v94 = vand.u32 %v93, 127
    %vm96 = vcmp.lt.s32.totalorder %v94, 8
    %v97 = vsel %vm96, %v92, %v9
    %s98 = scalar_lea.vmem [#allocation13], 24
    %s100 = ssub.s32 256, 1
    %101 = vst [vmem:[%s98] sm:%s100] %v97
    %s102 = scalar_lea.vmem %s0, 32
    %v103 = vld [vmem:[%s102] sm:$0xff]
    %v104 = vlaneseq
    %v105 = vand.u32 %v104, 127
    %vm107 = vcmp.lt.s32.totalorder %v105, 8
    %v108 = vsel %vm107, %v103, %v9
    %s109 = scalar_lea.vmem [#allocation13], 32
    %s111 = ssub.s32 256, 1
    %112 = vst [vmem:[%s109] sm:%s111] %v108
    %s113 = scalar_lea.vmem %s0, 40
    %v114 = vld [vmem:[%s113] sm:$0xff]
    %v115 = vlaneseq
    %v116 = vand.u32 %v115, 127
    %vm118 = vcmp.lt.s32.totalorder %v116, 8
    %v119 = vsel %vm118, %v114, %v9
    %s120 = scalar_lea.vmem [#allocation13], 40
    %s122 = ssub.s32 256, 1
    %123 = vst [vmem:[%s120] sm:%s122] %v119
    %s124 = scalar_lea.vmem %s0, 48
    %v125 = vld [vmem:[%s124] sm:$0xff]
    %v126 = vlaneseq
    %v127 = vand.u32 %v126, 127
    %vm129 = vcmp.lt.s32.totalorder %v127, 8
    %v130 = vsel %vm129, %v125, %v9
    %s131 = scalar_lea.vmem [#allocation13], 48
    %s133 = ssub.s32 256, 1
    %134 = vst [vmem:[%s131] sm:%s133] %v130
    %s135 = scalar_lea.vmem %s0, 56
    %v136 = vld [vmem:[%s135] sm:$0xff]
    %v137 = vlaneseq
    %v138 = vand.u32 %v137, 127
    %vm140 = vcmp.lt.s32.totalorder %v138, 8
    %v141 = vsel %vm140, %v136, %v9
    %s142 = scalar_lea.vmem [#allocation13], 56
    %s144 = ssub.s32 256, 1
    %145 = vst [vmem:[%s142] sm:%s144] %v141
    %s146 = scalar_lea.vmem %s0, 64
    %v147 = vld [vmem:[%s146] sm:$0xff]
    %v148 = vlaneseq
    %v149 = vand.u32 %v148, 127
    %vm151 = vcmp.lt.s32.totalorder %v149, 8
    %v152 = vsel %vm151, %v147, %v9
    %s153 = scalar_lea.vmem [#allocation13], 64
    %s155 = ssub.s32 256, 1
    %156 = vst [vmem:[%s153] sm:%s155] %v152
    %s157 = scalar_lea.vmem %s0, 72
    %v158 = vld [vmem:[%s157] sm:$0xff]
    %v159 = vlaneseq
    %v160 = vand.u32 %v159, 127
    %vm162 = vcmp.lt.s32.totalorder %v160, 8
    %v163 = vsel %vm162, %v158, %v9
    %s164 = scalar_lea.vmem [#allocation13], 72
    %s166 = ssub.s32 256, 1
    %167 = vst [vmem:[%s164] sm:%s166] %v163
    %s168 = scalar_lea.vmem %s0, 80
    %v169 = vld [vmem:[%s168] sm:$0xff]
    %v170 = vlaneseq
    %v171 = vand.u32 %v170, 127
    %vm173 = vcmp.lt.s32.totalorder %v171, 8
    %v174 = vsel %vm173, %v169, %v9
    %s175 = scalar_lea.vmem [#allocation13], 80
    %s177 = ssub.s32 256, 1
    %178 = vst [vmem:[%s175] sm:%s177] %v174
    %s179 = scalar_lea.vmem %s0, 88
    %v180 = vld [vmem:[%s179] sm:$0xff]
    %v181 = vlaneseq
    %v182 = vand.u32 %v181, 127
    %vm184 = vcmp.lt.s32.totalorder %v182, 8
    %v185 = vsel %vm184, %v180, %v9
    %s186 = scalar_lea.vmem [#allocation13], 88
    %s188 = ssub.s32 256, 1
    %189 = vst [vmem:[%s186] sm:%s188] %v185
    %s190 = scalar_lea.vmem %s0, 96
    %v191 = vld [vmem:[%s190] sm:$0xff]
    %v192 = vlaneseq
    %v193 = vand.u32 %v192, 127
    %vm195 = vcmp.lt.s32.totalorder %v193, 8
    %v196 = vsel %vm195, %v191, %v9
    %s197 = scalar_lea.vmem [#allocation13], 96
    %s199 = ssub.s32 256, 1
    %200 = vst [vmem:[%s197] sm:%s199] %v196
    %s201 = scalar_lea.vmem %s0, 104
    %v202 = vld [vmem:[%s201] sm:$0xff]
    %v203 = vlaneseq
    %v204 = vand.u32 %v203, 127
    %vm206 = vcmp.lt.s32.totalorder %v204, 8
    %v207 = vsel %vm206, %v202, %v9
    %s208 = scalar_lea.vmem [#allocation13], 104
    %s210 = ssub.s32 256, 1
    %211 = vst [vmem:[%s208] sm:%s210] %v207
    %s212 = scalar_lea.vmem %s0, 112
    %v213 = vld [vmem:[%s212] sm:$0xff]
    %v214 = vlaneseq
    %v215 = vand.u32 %v214, 127
    %vm217 = vcmp.lt.s32.totalorder %v215, 8
    %v218 = vsel %vm217, %v213, %v9
    %s219 = scalar_lea.vmem [#allocation13], 112
    %s221 = ssub.s32 256, 1
    %222 = vst [vmem:[%s219] sm:%s221] %v218
    %s223 = scalar_lea.vmem %s0, 120
    %v224 = vld [vmem:[%s223] sm:$0xff]
    %v225 = vlaneseq
    %v226 = vand.u32 %v225, 127
    %vm228 = vcmp.lt.s32.totalorder %v226, 8
    %v229 = vsel %vm228, %v224, %v9
    %s230 = scalar_lea.vmem [#allocation13], 120
    %s232 = ssub.s32 256, 1
    %233 = vst [vmem:[%s230] sm:%s232] %v229
    %s234 = scalar_lea.vmem %s0, 128
    %v235 = vld [vmem:[%s234] sm:$0xff]
    %v236 = vlaneseq
    %v237 = vand.u32 %v236, 127
    %vm239 = vcmp.lt.s32.totalorder %v237, 8
    %v240 = vsel %vm239, %v235, %v9
    %s241 = scalar_lea.vmem [#allocation13], 128
    %s243 = ssub.s32 256, 1
    %244 = vst [vmem:[%s241] sm:%s243] %v240
    %s245 = scalar_lea.vmem %s0, 136
    %v246 = vld [vmem:[%s245] sm:$0xff]
    %v247 = vlaneseq
    %v248 = vand.u32 %v247, 127
    %vm250 = vcmp.lt.s32.totalorder %v248, 8
    %v251 = vsel %vm250, %v246, %v9
    %s252 = scalar_lea.vmem [#allocation13], 136
    %s254 = ssub.s32 256, 1
    %255 = vst [vmem:[%s252] sm:%s254] %v251
    %s256 = scalar_lea.vmem %s0, 144
    %v257 = vld [vmem:[%s256] sm:$0xff]
    %v258 = vlaneseq
    %v259 = vand.u32 %v258, 127
    %vm261 = vcmp.lt.s32.totalorder %v259, 8
    %v262 = vsel %vm261, %v257, %v9
    %s263 = scalar_lea.vmem [#allocation13], 144
    %s265 = ssub.s32 256, 1
    %266 = vst [vmem:[%s263] sm:%s265] %v262
    %s267 = scalar_lea.vmem %s0, 152
    %v268 = vld [vmem:[%s267] sm:$0xff]
    %v269 = vlaneseq
    %v270 = vand.u32 %v269, 127
    %vm272 = vcmp.lt.s32.totalorder %v270, 8
    %v273 = vsel %vm272, %v268, %v9
    %s274 = scalar_lea.vmem [#allocation13], 152
    %s276 = ssub.s32 256, 1
    %277 = vst [vmem:[%s274] sm:%s276] %v273
    %s278 = scalar_lea.vmem %s0, 160
    %v279 = vld [vmem:[%s278] sm:$0xff]
    %v280 = vlaneseq
    %v281 = vand.u32 %v280, 127
    %vm283 = vcmp.lt.s32.totalorder %v281, 8
    %v284 = vsel %vm283, %v279, %v9
    %s285 = scalar_lea.vmem [#allocation13], 160
    %s287 = ssub.s32 256, 1
    %288 = vst [vmem:[%s285] sm:%s287] %v284
    %s289 = scalar_lea.vmem %s0, 168
    %v290 = vld [vmem:[%s289] sm:$0xff]
    %v291 = vlaneseq
    %v292 = vand.u32 %v291, 127
    %vm294 = vcmp.lt.s32.totalorder %v292, 8
    %v295 = vsel %vm294, %v290, %v9
    %s296 = scalar_lea.vmem [#allocation13], 168
    %s298 = ssub.s32 256, 1
    %299 = vst [vmem:[%s296] sm:%s298] %v295
    %s300 = scalar_lea.vmem %s0, 176
    %v301 = vld [vmem:[%s300] sm:$0xff]
    %v302 = vlaneseq
    %v303 = vand.u32 %v302, 127
    %vm305 = vcmp.lt.s32.totalorder %v303, 8
    %v306 = vsel %vm305, %v301, %v9
    %s307 = scalar_lea.vmem [#allocation13], 176
    %s309 = ssub.s32 256, 1
    %310 = vst [vmem:[%s307] sm:%s309] %v306
    %s311 = scalar_lea.vmem %s0, 184
    %v312 = vld [vmem:[%s311] sm:$0xff]
    %v313 = vlaneseq
    %v314 = vand.u32 %v313, 127
    %vm316 = vcmp.lt.s32.totalorder %v314, 8
    %v317 = vsel %vm316, %v312, %v9
    %s318 = scalar_lea.vmem [#allocation13], 184
    %s320 = ssub.s32 256, 1
    %321 = vst [vmem:[%s318] sm:%s320] %v317
    %s322 = scalar_lea.vmem %s0, 192
    %v323 = vld [vmem:[%s322] sm:$0xff]
    %v324 = vlaneseq
    %v325 = vand.u32 %v324, 127
    %vm327 = vcmp.lt.s32.totalorder %v325, 8
    %v328 = vsel %vm327, %v323, %v9
    %s329 = scalar_lea.vmem [#allocation13], 192
    %s331 = ssub.s32 256, 1
    %332 = vst [vmem:[%s329] sm:%s331] %v328
    %s333 = scalar_lea.vmem %s0, 200
    %v334 = vld [vmem:[%s333] sm:$0xff]
    %v335 = vlaneseq
    %v336 = vand.u32 %v335, 127
    %vm338 = vcmp.lt.s32.totalorder %v336, 8
    %v339 = vsel %vm338, %v334, %v9
    %s340 = scalar_lea.vmem [#allocation13], 200
    %s342 = ssub.s32 256, 1
    %343 = vst [vmem:[%s340] sm:%s342] %v339
    %s344 = scalar_lea.vmem %s0, 208
    %v345 = vld [vmem:[%s344] sm:$0xff]
    %v346 = vlaneseq
    %v347 = vand.u32 %v346, 127
    %vm349 = vcmp.lt.s32.totalorder %v347, 8
    %v350 = vsel %vm349, %v345, %v9
    %s351 = scalar_lea.vmem [#allocation13], 208
    %s353 = ssub.s32 256, 1
    %354 = vst [vmem:[%s351] sm:%s353] %v350
    %s355 = scalar_lea.vmem %s0, 216
    %v356 = vld [vmem:[%s355] sm:$0xff]
    %v357 = vlaneseq
    %v358 = vand.u32 %v357, 127
    %vm360 = vcmp.lt.s32.totalorder %v358, 8
    %v361 = vsel %vm360, %v356, %v9
    %s362 = scalar_lea.vmem [#allocation13], 216
    %s364 = ssub.s32 256, 1
    %365 = vst [vmem:[%s362] sm:%s364] %v361
    %s366 = scalar_lea.vmem %s0, 224
    %v367 = vld [vmem:[%s366] sm:$0xff]
    %v368 = vlaneseq
    %v369 = vand.u32 %v368, 127
    %vm371 = vcmp.lt.s32.totalorder %v369, 8
    %v372 = vsel %vm371, %v367, %v9
    %s373 = scalar_lea.vmem [#allocation13], 224
    %s375 = ssub.s32 256, 1
    %376 = vst [vmem:[%s373] sm:%s375] %v372
    %s377 = scalar_lea.vmem %s0, 232
    %v378 = vld [vmem:[%s377] sm:$0xff]
    %v379 = vlaneseq
    %v380 = vand.u32 %v379, 127
    %vm382 = vcmp.lt.s32.totalorder %v380, 8
    %v383 = vsel %vm382, %v378, %v9
    %s384 = scalar_lea.vmem [#allocation13], 232
    %s386 = ssub.s32 256, 1
    %387 = vst [vmem:[%s384] sm:%s386] %v383
    %s388 = scalar_lea.vmem %s0, 240
    %v389 = vld [vmem:[%s388] sm:$0xff]
    %v390 = vlaneseq
    %v391 = vand.u32 %v390, 127
    %vm393 = vcmp.lt.s32.totalorder %v391, 8
    %v394 = vsel %vm393, %v389, %v9
    %s395 = scalar_lea.vmem [#allocation13], 240
    %s397 = ssub.s32 256, 1
    %398 = vst [vmem:[%s395] sm:%s397] %v394
    %s399 = scalar_lea.vmem %s0, 248
    %v400 = vld [vmem:[%s399] sm:$0xff]
    %v401 = vlaneseq
    %v402 = vand.u32 %v401, 127
    %vm404 = vcmp.lt.s32.totalorder %v402, 8
    %v405 = vsel %vm404, %v400, %v9
    %s406 = scalar_lea.vmem [#allocation13], 248
    %s408 = ssub.s32 256, 1
    %409 = vst [vmem:[%s406] sm:%s408] %v405
    %v410 = vld [vmem:[#allocation12] sm:$0x7]
    %v411 = vld [vmem:[#allocation12 + $0x4] sm:$0x7]
    %v412 = vld [vmem:[#allocation12 + $0x8] sm:$0x7]
    %v413 = vld [vmem:[#allocation13] sm:$0xff]
    %v414 = vld [vmem:[#allocation13 + $0x8] sm:$0x3f]
    %v415 = vld [vmem:[#allocation13 + $0x10] sm:$0xff]
    %v416 = vld [vmem:[#allocation13 + $0x18] sm:$0x3f]
    %v417 = vld [vmem:[#allocation13 + $0x20] sm:$0xff]
    %v418 = vld [vmem:[#allocation13 + $0x28] sm:$0x3f]
    %v419 = vld [vmem:[#allocation13 + $0x30] sm:$0xff]
    %v420 = vld [vmem:[#allocation13 + $0x38] sm:$0x3f]
    %v421 = vld [vmem:[#allocation13 + $0x40] sm:$0xff]
    %v422 = vld [vmem:[#allocation13 + $0x48] sm:$0x3f]
    %v423 = vld [vmem:[#allocation13 + $0x50] sm:$0xff]
    %v424 = vld [vmem:[#allocation13 + $0x58] sm:$0x3f]
    %v425 = vld [vmem:[#allocation13 + $0x60] sm:$0xff]
    %v426 = vld [vmem:[#allocation13 + $0x68] sm:$0x3f]
    %v427 = vld [vmem:[#allocation13 + $0x70] sm:$0xff]
    %v428 = vld [vmem:[#allocation13 + $0x78] sm:$0x3f]
    %v429 = vld [vmem:[#allocation13 + $0x80] sm:$0xff]
    %v430 = vld [vmem:[#allocation13 + $0x88] sm:$0x3f]
    %v431 = vld [vmem:[#allocation13 + $0x90] sm:$0xff]
    %v432 = vld [vmem:[#allocation13 + $0x98] sm:$0x3f]
    %v433 = vld [vmem:[#allocation13 + $0xa0] sm:$0xff]
    %v434 = vld [vmem:[#allocation13 + $0xa8] sm:$0x3f]
    %v435 = vld [vmem:[#allocation13 + $0xb0] sm:$0xff]
    %v436 = vld [vmem:[#allocation13 + $0xb8] sm:$0x3f]
    %v437 = vld [vmem:[#allocation13 + $0xc0] sm:$0xff]
    %v438 = vld [vmem:[#allocation13 + $0xc8] sm:$0x3f]
    %v439 = vld [vmem:[#allocation13 + $0xd0] sm:$0xff]
    %v440 = vld [vmem:[#allocation13 + $0xd8] sm:$0x3f]
    %v441 = vld [vmem:[#allocation13 + $0xe0] sm:$0xff]
    %v442 = vld [vmem:[#allocation13 + $0xe8] sm:$0x3f]
    %v443 = vld [vmem:[#allocation13 + $0xf0] sm:$0xff]
    %v444 = vld [vmem:[#allocation13 + $0xf8] sm:$0x3f]
    %v445 = vld [vmem:[#allocation13 + $0x1] sm:$0xff]
    %v446 = vld [vmem:[#allocation13 + $0x9] sm:$0x3f]
    %v447 = vld [vmem:[#allocation13 + $0x11] sm:$0xff]
    %v448 = vld [vmem:[#allocation13 + $0x19] sm:$0x3f]
    %v449 = vld [vmem:[#allocation13 + $0x21] sm:$0xff]
    %v450 = vld [vmem:[#allocation13 + $0x29] sm:$0x3f]
    %v451 = vld [vmem:[#allocation13 + $0x31] sm:$0xff]
    %v452 = vld [vmem:[#allocation13 + $0x39] sm:$0x3f]
    %v453 = vld [vmem:[#allocation13 + $0x41] sm:$0xff]
    %v454 = vld [vmem:[#allocation13 + $0x49] sm:$0x3f]
    %v455 = vld [vmem:[#allocation13 + $0x51] sm:$0xff]
    %v456 = vld [vmem:[#allocation13 + $0x59] sm:$0x3f]
    %v457 = vld [vmem:[#allocation13 + $0x61] sm:$0xff]
    %v458 = vld [vmem:[#allocation13 + $0x69] sm:$0x3f]
    %v459 = vld [vmem:[#allocation13 + $0x71] sm:$0xff]
    %v460 = vld [vmem:[#allocation13 + $0x79] sm:$0x3f]
    %v461 = vld [vmem:[#allocation13 + $0x81] sm:$0xff]
    %v462 = vld [vmem:[#allocation13 + $0x89] sm:$0x3f]
    %v463 = vld [vmem:[#allocation13 + $0x91] sm:$0xff]
    %v464 = vld [vmem:[#allocation13 + $0x99] sm:$0x3f]
    %v465 = vld [vmem:[#allocation13 + $0xa1] sm:$0xff]
    %v466 = vld [vmem:[#allocation13 + $0xa9] sm:$0x3f]
    %v467 = vld [vmem:[#allocation13 + $0xb1] sm:$0xff]
    %v468 = vld [vmem:[#allocation13 + $0xb9] sm:$0x3f]
    %v469 = vld [vmem:[#allocation13 + $0xc1] sm:$0xff]
    %v470 = vld [vmem:[#allocation13 + $0xc9] sm:$0x3f]
    %v471 = vld [vmem:[#allocation13 + $0xd1] sm:$0xff]
    %v472 = vld [vmem:[#allocation13 + $0xd9] sm:$0x3f]
    %v473 = vld [vmem:[#allocation13 + $0xe1] sm:$0xff]
    %v474 = vld [vmem:[#allocation13 + $0xe9] sm:$0x3f]
    %v475 = vld [vmem:[#allocation13 + $0xf1] sm:$0xff]
    %v476 = vld [vmem:[#allocation13 + $0xf9] sm:$0x3f]
    %v477 = vld [vmem:[#allocation13 + $0x2] sm:$0xff]
    %v478 = vld [vmem:[#allocation13 + $0xa] sm:$0x3f]
    %v479 = vld [vmem:[#allocation13 + $0x12] sm:$0xff]
    %v480 = vld [vmem:[#allocation13 + $0x1a] sm:$0x3f]
    %v481 = vld [vmem:[#allocation13 + $0x22] sm:$0xff]
    %v482 = vld [vmem:[#allocation13 + $0x2a] sm:$0x3f]
    %v483 = vld [vmem:[#allocation13 + $0x32] sm:$0xff]
    %v484 = vld [vmem:[#allocation13 + $0x3a] sm:$0x3f]
    %v485 = vld [vmem:[#allocation13 + $0x42] sm:$0xff]
    %v486 = vld [vmem:[#allocation13 + $0x4a] sm:$0x3f]
    %v487 = vld [vmem:[#allocation13 + $0x52] sm:$0xff]
    %v488 = vld [vmem:[#allocation13 + $0x5a] sm:$0x3f]
    %v489 = vld [vmem:[#allocation13 + $0x62] sm:$0xff]
    %v490 = vld [vmem:[#allocation13 + $0x6a] sm:$0x3f]
    %v491 = vld [vmem:[#allocation13 + $0x72] sm:$0xff]
    %v492 = vld [vmem:[#allocation13 + $0x7a] sm:$0x3f]
    %v493 = vld [vmem:[#allocation13 + $0x82] sm:$0xff]
    %v494 = vld [vmem:[#allocation13 + $0x8a] sm:$0x3f]
    %v495 = vld [vmem:[#allocation13 + $0x92] sm:$0xff]
    %v496 = vld [vmem:[#allocation13 + $0x9a] sm:$0x3f]
    %v497 = vld [vmem:[#allocation13 + $0xa2] sm:$0xff]
    %v498 = vld [vmem:[#allocation13 + $0xaa] sm:$0x3f]
    %v499 = vld [vmem:[#allocation13 + $0xb2] sm:$0xff]
    %v500 = vld [vmem:[#allocation13 + $0xba] sm:$0x3f]
    %v501 = vld [vmem:[#allocation13 + $0xc2] sm:$0xff]
    %v502 = vld [vmem:[#allocation13 + $0xca] sm:$0x3f]
    %v503 = vld [vmem:[#allocation13 + $0xd2] sm:$0xff]
    %v504 = vld [vmem:[#allocation13 + $0xda] sm:$0x3f]
    %v505 = vld [vmem:[#allocation13 + $0xe2] sm:$0xff]
    %v506 = vld [vmem:[#allocation13 + $0xea] sm:$0x3f]
    %v507 = vld [vmem:[#allocation13 + $0xf2] sm:$0xff]
    %v508 = vld [vmem:[#allocation13 + $0xfa] sm:$0x3f]
    %v509 = vlaneseq
    %v510 = vshrl.u32 %v509, 7
    %v511 = vsub.s32 0, %v510
    %v512 = vrot.slane %v410, %v511
    %v513 = vmul.f32 %v512, %v413
    %v514 = vmul.f32 %v512, %v414
    %v515 = vmul.f32 %v512, %v415
    %v516 = vmul.f32 %v512, %v416
    %v517 = vmul.f32 %v512, %v417
    %v518 = vmul.f32 %v512, %v418
    %v519 = vmul.f32 %v512, %v419
    %v520 = vmul.f32 %v512, %v420
    %v521 = vmul.f32 %v512, %v421
    %v522 = vmul.f32 %v512, %v422
    %v523 = vmul.f32 %v512, %v423
    %v524 = vmul.f32 %v512, %v424
    %v525 = vmul.f32 %v512, %v425
    %v526 = vmul.f32 %v512, %v426
    %v527 = vmul.f32 %v512, %v427
    %v528 = vmul.f32 %v512, %v428
    %v529 = vmul.f32 %v512, %v429
    %v530 = vmul.f32 %v512, %v430
    %v531 = vmul.f32 %v512, %v431
    %v532 = vmul.f32 %v512, %v432
    %v533 = vmul.f32 %v512, %v433
    %v534 = vmul.f32 %v512, %v434
    %v535 = vmul.f32 %v512, %v435
    %v536 = vmul.f32 %v512, %v436
    %v537 = vmul.f32 %v512, %v437
    %v538 = vmul.f32 %v512, %v438
    %v539 = vmul.f32 %v512, %v439
    %v540 = vmul.f32 %v512, %v440
    %v541 = vlaneseq
    %v542 = vshrl.u32 %v541, 7
    %v543 = vsub.s32 1, %v542
    %v544 = vrot.slane %v410, %v543
    %v545 = vmul.f32 %v544, %v445
    %v546 = vmul.f32 %v544, %v446
    %v547 = vmul.f32 %v544, %v447
    %v548 = vmul.f32 %v544, %v448
    %v549 = vmul.f32 %v544, %v449
    %v550 = vmul.f32 %v544, %v450
    %v551 = vmul.f32 %v544, %v451
    %v552 = vmul.f32 %v544, %v452
    %v553 = vmul.f32 %v544, %v453
    %v554 = vmul.f32 %v544, %v454
    %v555 = vmul.f32 %v544, %v455
    %v556 = vmul.f32 %v544, %v456
    %v557 = vmul.f32 %v544, %v457
    %v558 = vmul.f32 %v544, %v458
    %v559 = vmul.f32 %v544, %v459
    %v560 = vmul.f32 %v544, %v460
    %v561 = vmul.f32 %v544, %v461
    %v562 = vmul.f32 %v544, %v462
    %v563 = vmul.f32 %v544, %v463
    %v564 = vmul.f32 %v544, %v464
    %v565 = vmul.f32 %v544, %v465
    %v566 = vmul.f32 %v544, %v466
    %v567 = vmul.f32 %v544, %v467
    %v568 = vmul.f32 %v544, %v468
    %v569 = vmul.f32 %v544, %v469
    %v570 = vmul.f32 %v544, %v470
    %v571 = vmul.f32 %v544, %v471
    %v572 = vmul.f32 %v544, %v472
    %v573 = vadd.f32 %v513, %v545
    %v574 = vadd.f32 %v514, %v546
    %v575 = vadd.f32 %v515, %v547
    %v576 = vadd.f32 %v516, %v548
    %v577 = vadd.f32 %v517, %v549
    %v578 = vadd.f32 %v518, %v550
    %v579 = vadd.f32 %v519, %v551
    %v580 = vadd.f32 %v520, %v552
    %v581 = vadd.f32 %v521, %v553
    %v582 = vadd.f32 %v522, %v554
    %v583 = vadd.f32 %v523, %v555
    %v584 = vadd.f32 %v524, %v556
    %v585 = vadd.f32 %v525, %v557
    %v586 = vadd.f32 %v526, %v558
    %v587 = vadd.f32 %v527, %v559
    %v588 = vadd.f32 %v528, %v560
    %v589 = vadd.f32 %v529, %v561
    %v590 = vadd.f32 %v530, %v562
    %v591 = vadd.f32 %v531, %v563
    %v592 = vadd.f32 %v532, %v564
    %v593 = vadd.f32 %v533, %v565
    %v594 = vadd.f32 %v534, %v566
    %v595 = vadd.f32 %v535, %v567
    %v596 = vadd.f32 %v536, %v568
    %v597 = vadd.f32 %v537, %v569
    %v598 = vadd.f32 %v538, %v570
    %v599 = vadd.f32 %v539, %v571
    %v600 = vadd.f32 %v540, %v572
    %v601 = vlaneseq
    %v602 = vshrl.u32 %v601, 7
    %v603 = vsub.s32 2, %v602
    %v604 = vrot.slane %v410, %v603
    %v605 = vmul.f32 %v604, %v477
    %v606 = vmul.f32 %v604, %v478
    %v607 = vmul.f32 %v604, %v479
    %v608 = vmul.f32 %v604, %v480
    %v609 = vmul.f32 %v604, %v481
    %v610 = vmul.f32 %v604, %v482
    %v611 = vmul.f32 %v604, %v483
    %v612 = vmul.f32 %v604, %v484
    %v613 = vmul.f32 %v604, %v485
    %v614 = vmul.f32 %v604, %v486
    %v615 = vmul.f32 %v604, %v487
    %v616 = vmul.f32 %v604, %v488
    %v617 = vmul.f32 %v604, %v489
    %v618 = vmul.f32 %v604, %v490
    %v619 = vmul.f32 %v604, %v491
    %v620 = vmul.f32 %v604, %v492
    %v621 = vmul.f32 %v604, %v493
    %v622 = vmul.f32 %v604, %v494
    %v623 = vmul.f32 %v604, %v495
    %v624 = vmul.f32 %v604, %v496
    %v625 = vmul.f32 %v604, %v497
    %v626 = vmul.f32 %v604, %v498
    %v627 = vmul.f32 %v604, %v499
    %v628 = vmul.f32 %v604, %v500
    %v629 = vmul.f32 %v604, %v501
    %v630 = vmul.f32 %v604, %v502
    %v631 = vmul.f32 %v604, %v503
    %v632 = vmul.f32 %v604, %v504
    %v633 = vadd.f32 %v573, %v605
    %v634 = vadd.f32 %v574, %v606
    %v635 = vadd.f32 %v575, %v607
    %v636 = vadd.f32 %v576, %v608
    %v637 = vadd.f32 %v577, %v609
    %v638 = vadd.f32 %v578, %v610
    %v639 = vadd.f32 %v579, %v611
    %v640 = vadd.f32 %v580, %v612
    %v641 = vadd.f32 %v581, %v613
    %v642 = vadd.f32 %v582, %v614
    %v643 = vadd.f32 %v583, %v615
    %v644 = vadd.f32 %v584, %v616
    %v645 = vadd.f32 %v585, %v617
    %v646 = vadd.f32 %v586, %v618
    %v647 = vadd.f32 %v587, %v619
    %v648 = vadd.f32 %v588, %v620
    %v649 = vadd.f32 %v589, %v621
    %v650 = vadd.f32 %v590, %v622
    %v651 = vadd.f32 %v591, %v623
    %v652 = vadd.f32 %v592, %v624
    %v653 = vadd.f32 %v593, %v625
    %v654 = vadd.f32 %v594, %v626
    %v655 = vadd.f32 %v595, %v627
    %v656 = vadd.f32 %v596, %v628
    %v657 = vadd.f32 %v597, %v629
    %v658 = vadd.f32 %v598, %v630
    %v659 = vadd.f32 %v599, %v631
    %v660 = vadd.f32 %v600, %v632
    %v661 = vlaneseq
    %v662 = vshrl.u32 %v661, 7
    %v663 = vsub.s32 0, %v662
    %v664 = vrot.slane %v411, %v663
    %v665 = vmul.f32 %v664, %v415
    %v666 = vmul.f32 %v664, %v416
    %v667 = vmul.f32 %v664, %v417
    %v668 = vmul.f32 %v664, %v418
    %v669 = vmul.f32 %v664, %v419
    %v670 = vmul.f32 %v664, %v420
    %v671 = vmul.f32 %v664, %v421
    %v672 = vmul.f32 %v664, %v422
    %v673 = vmul.f32 %v664, %v423
    %v674 = vmul.f32 %v664, %v424
    %v675 = vmul.f32 %v664, %v425
    %v676 = vmul.f32 %v664, %v426
    %v677 = vmul.f32 %v664, %v427
    %v678 = vmul.f32 %v664, %v428
    %v679 = vmul.f32 %v664, %v429
    %v680 = vmul.f32 %v664, %v430
    %v681 = vmul.f32 %v664, %v431
    %v682 = vmul.f32 %v664, %v432
    %v683 = vmul.f32 %v664, %v433
    %v684 = vmul.f32 %v664, %v434
    %v685 = vmul.f32 %v664, %v435
    %v686 = vmul.f32 %v664, %v436
    %v687 = vmul.f32 %v664, %v437
    %v688 = vmul.f32 %v664, %v438
    %v689 = vmul.f32 %v664, %v439
    %v690 = vmul.f32 %v664, %v440
    %v691 = vmul.f32 %v664, %v441
    %v692 = vmul.f32 %v664, %v442
    %v693 = vadd.f32 %v633, %v665
    %v694 = vadd.f32 %v634, %v666
    %v695 = vadd.f32 %v635, %v667
    %v696 = vadd.f32 %v636, %v668
    %v697 = vadd.f32 %v637, %v669
    %v698 = vadd.f32 %v638, %v670
    %v699 = vadd.f32 %v639, %v671
    %v700 = vadd.f32 %v640, %v672
    %v701 = vadd.f32 %v641, %v673
    %v702 = vadd.f32 %v642, %v674
    %v703 = vadd.f32 %v643, %v675
    %v704 = vadd.f32 %v644, %v676
    %v705 = vadd.f32 %v645, %v677
    %v706 = vadd.f32 %v646, %v678
    %v707 = vadd.f32 %v647, %v679
    %v708 = vadd.f32 %v648, %v680
    %v709 = vadd.f32 %v649, %v681
    %v710 = vadd.f32 %v650, %v682
    %v711 = vadd.f32 %v651, %v683
    %v712 = vadd.f32 %v652, %v684
    %v713 = vadd.f32 %v653, %v685
    %v714 = vadd.f32 %v654, %v686
    %v715 = vadd.f32 %v655, %v687
    %v716 = vadd.f32 %v656, %v688
    %v717 = vadd.f32 %v657, %v689
    %v718 = vadd.f32 %v658, %v690
    %v719 = vadd.f32 %v659, %v691
    %v720 = vadd.f32 %v660, %v692
    %v721 = vlaneseq
    %v722 = vshrl.u32 %v721, 7
    %v723 = vsub.s32 1, %v722
    %v724 = vrot.slane %v411, %v723
    %v725 = vmul.f32 %v724, %v447
    %v726 = vmul.f32 %v724, %v448
    %v727 = vmul.f32 %v724, %v449
    %v728 = vmul.f32 %v724, %v450
    %v729 = vmul.f32 %v724, %v451
    %v730 = vmul.f32 %v724, %v452
    %v731 = vmul.f32 %v724, %v453
    %v732 = vmul.f32 %v724, %v454
    %v733 = vmul.f32 %v724, %v455
    %v734 = vmul.f32 %v724, %v456
    %v735 = vmul.f32 %v724, %v457
    %v736 = vmul.f32 %v724, %v458
    %v737 = vmul.f32 %v724, %v459
    %v738 = vmul.f32 %v724, %v460
    %v739 = vmul.f32 %v724, %v461
    %v740 = vmul.f32 %v724, %v462
    %v741 = vmul.f32 %v724, %v463
    %v742 = vmul.f32 %v724, %v464
    %v743 = vmul.f32 %v724, %v465
    %v744 = vmul.f32 %v724, %v466
    %v745 = vmul.f32 %v724, %v467
    %v746 = vmul.f32 %v724, %v468
    %v747 = vmul.f32 %v724, %v469
    %v748 = vmul.f32 %v724, %v470
    %v749 = vmul.f32 %v724, %v471
    %v750 = vmul.f32 %v724, %v472
    %v751 = vmul.f32 %v724, %v473
    %v752 = vmul.f32 %v724, %v474
    %v753 = vadd.f32 %v693, %v725
    %v754 = vadd.f32 %v694, %v726
    %v755 = vadd.f32 %v695, %v727
    %v756 = vadd.f32 %v696, %v728
    %v757 = vadd.f32 %v697, %v729
    %v758 = vadd.f32 %v698, %v730
    %v759 = vadd.f32 %v699, %v731
    %v760 = vadd.f32 %v700, %v732
    %v761 = vadd.f32 %v701, %v733
    %v762 = vadd.f32 %v702, %v734
    %v763 = vadd.f32 %v703, %v735
    %v764 = vadd.f32 %v704, %v736
    %v765 = vadd.f32 %v705, %v737
    %v766 = vadd.f32 %v706, %v738
    %v767 = vadd.f32 %v707, %v739
    %v768 = vadd.f32 %v708, %v740
    %v769 = vadd.f32 %v709, %v741
    %v770 = vadd.f32 %v710, %v742
    %v771 = vadd.f32 %v711, %v743
    %v772 = vadd.f32 %v712, %v744
    %v773 = vadd.f32 %v713, %v745
    %v774 = vadd.f32 %v714, %v746
    %v775 = vadd.f32 %v715, %v747
    %v776 = vadd.f32 %v716, %v748
    %v777 = vadd.f32 %v717, %v749
    %v778 = vadd.f32 %v718, %v750
    %v779 = vadd.f32 %v719, %v751
    %v780 = vadd.f32 %v720, %v752
    %v781 = vlaneseq
    %v782 = vshrl.u32 %v781, 7
    %v783 = vsub.s32 2, %v782
    %v784 = vrot.slane %v411, %v783
    %v785 = vmul.f32 %v784, %v479
    %v786 = vmul.f32 %v784, %v480
    %v787 = vmul.f32 %v784, %v481
    %v788 = vmul.f32 %v784, %v482
    %v789 = vmul.f32 %v784, %v483
    %v790 = vmul.f32 %v784, %v484
    %v791 = vmul.f32 %v784, %v485
    %v792 = vmul.f32 %v784, %v486
    %v793 = vmul.f32 %v784, %v487
    %v794 = vmul.f32 %v784, %v488
    %v795 = vmul.f32 %v784, %v489
    %v796 = vmul.f32 %v784, %v490
    %v797 = vmul.f32 %v784, %v491
    %v798 = vmul.f32 %v784, %v492
    %v799 = vmul.f32 %v784, %v493
    %v800 = vmul.f32 %v784, %v494
    %v801 = vmul.f32 %v784, %v495
    %v802 = vmul.f32 %v784, %v496
    %v803 = vmul.f32 %v784, %v497
    %v804 = vmul.f32 %v784, %v498
    %v805 = vmul.f32 %v784, %v499
    %v806 = vmul.f32 %v784, %v500
    %v807 = vmul.f32 %v784, %v501
    %v808 = vmul.f32 %v784, %v502
    %v809 = vmul.f32 %v784, %v503
    %v810 = vmul.f32 %v784, %v504
    %v811 = vmul.f32 %v784, %v505
    %v812 = vmul.f32 %v784, %v506
    %v813 = vadd.f32 %v753, %v785
    %v814 = vadd.f32 %v754, %v786
    %v815 = vadd.f32 %v755, %v787
    %v816 = vadd.f32 %v756, %v788
    %v817 = vadd.f32 %v757, %v789
    %v818 = vadd.f32 %v758, %v790
    %v819 = vadd.f32 %v759, %v791
    %v820 = vadd.f32 %v760, %v792
    %v821 = vadd.f32 %v761, %v793
    %v822 = vadd.f32 %v762, %v794
    %v823 = vadd.f32 %v763, %v795
    %v824 = vadd.f32 %v764, %v796
    %v825 = vadd.f32 %v765, %v797
    %v826 = vadd.f32 %v766, %v798
    %v827 = vadd.f32 %v767, %v799
    %v828 = vadd.f32 %v768, %v800
    %v829 = vadd.f32 %v769, %v801
    %v830 = vadd.f32 %v770, %v802
    %v831 = vadd.f32 %v771, %v803
    %v832 = vadd.f32 %v772, %v804
    %v833 = vadd.f32 %v773, %v805
    %v834 = vadd.f32 %v774, %v806
    %v835 = vadd.f32 %v775, %v807
    %v836 = vadd.f32 %v776, %v808
    %v837 = vadd.f32 %v777, %v809
    %v838 = vadd.f32 %v778, %v810
    %v839 = vadd.f32 %v779, %v811
    %v840 = vadd.f32 %v780, %v812
    %v841 = vlaneseq
    %v842 = vshrl.u32 %v841, 7
    %v843 = vsub.s32 0, %v842
    %v844 = vrot.slane %v412, %v843
    %v845 = vmul.f32 %v844, %v417
    %v846 = vmul.f32 %v844, %v418
    %v847 = vmul.f32 %v844, %v419
    %v848 = vmul.f32 %v844, %v420
    %v849 = vmul.f32 %v844, %v421
    %v850 = vmul.f32 %v844, %v422
    %v851 = vmul.f32 %v844, %v423
    %v852 = vmul.f32 %v844, %v424
    %v853 = vmul.f32 %v844, %v425
    %v854 = vmul.f32 %v844, %v426
    %v855 = vmul.f32 %v844, %v427
    %v856 = vmul.f32 %v844, %v428
    %v857 = vmul.f32 %v844, %v429
    %v858 = vmul.f32 %v844, %v430
    %v859 = vmul.f32 %v844, %v431
    %v860 = vmul.f32 %v844, %v432
    %v861 = vmul.f32 %v844, %v433
    %v862 = vmul.f32 %v844, %v434
    %v863 = vmul.f32 %v844, %v435
    %v864 = vmul.f32 %v844, %v436
    %v865 = vmul.f32 %v844, %v437
    %v866 = vmul.f32 %v844, %v438
    %v867 = vmul.f32 %v844, %v439
    %v868 = vmul.f32 %v844, %v440
    %v869 = vmul.f32 %v844, %v441
    %v870 = vmul.f32 %v844, %v442
    %v871 = vmul.f32 %v844, %v443
    %v872 = vmul.f32 %v844, %v444
    %v873 = vadd.f32 %v813, %v845
    %v874 = vadd.f32 %v814, %v846
    %v875 = vadd.f32 %v815, %v847
    %v876 = vadd.f32 %v816, %v848
    %v877 = vadd.f32 %v817, %v849
    %v878 = vadd.f32 %v818, %v850
    %v879 = vadd.f32 %v819, %v851
    %v880 = vadd.f32 %v820, %v852
    %v881 = vadd.f32 %v821, %v853
    %v882 = vadd.f32 %v822, %v854
    %v883 = vadd.f32 %v823, %v855
    %v884 = vadd.f32 %v824, %v856
    %v885 = vadd.f32 %v825, %v857
    %v886 = vadd.f32 %v826, %v858
    %v887 = vadd.f32 %v827, %v859
    %v888 = vadd.f32 %v828, %v860
    %v889 = vadd.f32 %v829, %v861
    %v890 = vadd.f32 %v830, %v862
    %v891 = vadd.f32 %v831, %v863
    %v892 = vadd.f32 %v832, %v864
    %v893 = vadd.f32 %v833, %v865
    %v894 = vadd.f32 %v834, %v866
    %v895 = vadd.f32 %v835, %v867
    %v896 = vadd.f32 %v836, %v868
    %v897 = vadd.f32 %v837, %v869
    %v898 = vadd.f32 %v838, %v870
    %v899 = vadd.f32 %v839, %v871
    %v900 = vadd.f32 %v840, %v872
    %v901 = vlaneseq
    %v902 = vshrl.u32 %v901, 7
    %v903 = vsub.s32 1, %v902
    %v904 = vrot.slane %v412, %v903
    %v905 = vmul.f32 %v904, %v449
    %v906 = vmul.f32 %v904, %v450
    %v907 = vmul.f32 %v904, %v451
    %v908 = vmul.f32 %v904, %v452
    %v909 = vmul.f32 %v904, %v453
    %v910 = vmul.f32 %v904, %v454
    %v911 = vmul.f32 %v904, %v455
    %v912 = vmul.f32 %v904, %v456
    %v913 = vmul.f32 %v904, %v457
    %v914 = vmul.f32 %v904, %v458
    %v915 = vmul.f32 %v904, %v459
    %v916 = vmul.f32 %v904, %v460
    %v917 = vmul.f32 %v904, %v461
    %v918 = vmul.f32 %v904, %v462
    %v919 = vmul.f32 %v904, %v463
    %v920 = vmul.f32 %v904, %v464
    %v921 = vmul.f32 %v904, %v465
    %v922 = vmul.f32 %v904, %v466
    %v923 = vmul.f32 %v904, %v467
    %v924 = vmul.f32 %v904, %v468
    %v925 = vmul.f32 %v904, %v469
    %v926 = vmul.f32 %v904, %v470
    %v927 = vmul.f32 %v904, %v471
    %v928 = vmul.f32 %v904, %v472
    %v929 = vmul.f32 %v904, %v473
    %v930 = vmul.f32 %v904, %v474
    %v931 = vmul.f32 %v904, %v475
    %v932 = vmul.f32 %v904, %v476
    %v933 = vadd.f32 %v873, %v905
    %v934 = vadd.f32 %v874, %v906
    %v935 = vadd.f32 %v875, %v907
    %v936 = vadd.f32 %v876, %v908
    %v937 = vadd.f32 %v877, %v909
    %v938 = vadd.f32 %v878, %v910
    %v939 = vadd.f32 %v879, %v911
    %v940 = vadd.f32 %v880, %v912
    %v941 = vadd.f32 %v881, %v913
    %v942 = vadd.f32 %v882, %v914
    %v943 = vadd.f32 %v883, %v915
    %v944 = vadd.f32 %v884, %v916
    %v945 = vadd.f32 %v885, %v917
    %v946 = vadd.f32 %v886, %v918
    %v947 = vadd.f32 %v887, %v919
    %v948 = vadd.f32 %v888, %v920
    %v949 = vadd.f32 %v889, %v921
    %v950 = vadd.f32 %v890, %v922
    %v951 = vadd.f32 %v891, %v923
    %v952 = vadd.f32 %v892, %v924
    %v953 = vadd.f32 %v893, %v925
    %v954 = vadd.f32 %v894, %v926
    %v955 = vadd.f32 %v895, %v927
    %v956 = vadd.f32 %v896, %v928
    %v957 = vadd.f32 %v897, %v929
    %v958 = vadd.f32 %v898, %v930
    %v959 = vadd.f32 %v899, %v931
    %v960 = vadd.f32 %v900, %v932
    %v961 = vlaneseq
    %v962 = vshrl.u32 %v961, 7
    %v963 = vsub.s32 2, %v962
    %v964 = vrot.slane %v412, %v963
    %v965 = vmul.f32 %v964, %v481
    %v966 = vmul.f32 %v964, %v482
    %v967 = vmul.f32 %v964, %v483
    %v968 = vmul.f32 %v964, %v484
    %v969 = vmul.f32 %v964, %v485
    %v970 = vmul.f32 %v964, %v486
    %v971 = vmul.f32 %v964, %v487
    %v972 = vmul.f32 %v964, %v488
    %v973 = vmul.f32 %v964, %v489
    %v974 = vmul.f32 %v964, %v490
    %v975 = vmul.f32 %v964, %v491
    %v976 = vmul.f32 %v964, %v492
    %v977 = vmul.f32 %v964, %v493
    %v978 = vmul.f32 %v964, %v494
    %v979 = vmul.f32 %v964, %v495
    %v980 = vmul.f32 %v964, %v496
    %v981 = vmul.f32 %v964, %v497
    %v982 = vmul.f32 %v964, %v498
    %v983 = vmul.f32 %v964, %v499
    %v984 = vmul.f32 %v964, %v500
    %v985 = vmul.f32 %v964, %v501
    %v986 = vmul.f32 %v964, %v502
    %v987 = vmul.f32 %v964, %v503
    %v988 = vmul.f32 %v964, %v504
    %v989 = vmul.f32 %v964, %v505
    %v990 = vmul.f32 %v964, %v506
    %v991 = vmul.f32 %v964, %v507
    %v992 = vmul.f32 %v964, %v508
    %v993 = vadd.f32 %v933, %v965
    %v994 = vadd.f32 %v934, %v966
    %v995 = vadd.f32 %v935, %v967
    %v996 = vadd.f32 %v936, %v968
    %v997 = vadd.f32 %v937, %v969
    %v998 = vadd.f32 %v938, %v970
    %v999 = vadd.f32 %v939, %v971
    %v1000 = vadd.f32 %v940, %v972
    %v1001 = vadd.f32 %v941, %v973
    %v1002 = vadd.f32 %v942, %v974
    %v1003 = vadd.f32 %v943, %v975
    %v1004 = vadd.f32 %v944, %v976
    %v1005 = vadd.f32 %v945, %v977
    %v1006 = vadd.f32 %v946, %v978
    %v1007 = vadd.f32 %v947, %v979
    %v1008 = vadd.f32 %v948, %v980
    %v1009 = vadd.f32 %v949, %v981
    %v1010 = vadd.f32 %v950, %v982
    %v1011 = vadd.f32 %v951, %v983
    %v1012 = vadd.f32 %v952, %v984
    %v1013 = vadd.f32 %v953, %v985
    %v1014 = vadd.f32 %v954, %v986
    %v1015 = vadd.f32 %v955, %v987
    %v1016 = vadd.f32 %v956, %v988
    %v1017 = vadd.f32 %v957, %v989
    %v1018 = vadd.f32 %v958, %v990
    %v1019 = vadd.f32 %v959, %v991
    %v1020 = vadd.f32 %v960, %v992
    %v1021 = vand.u32 2147483647, %v993
    %v1022 = vand.u32 2147483647, %v994
    %v1023 = vand.u32 2147483647, %v995
    %v1024 = vand.u32 2147483647, %v996
    %v1025 = vand.u32 2147483647, %v997
    %v1026 = vand.u32 2147483647, %v998
    %v1027 = vand.u32 2147483647, %v999
    %v1028 = vand.u32 2147483647, %v1000
    %v1029 = vand.u32 2147483647, %v1001
    %v1030 = vand.u32 2147483647, %v1002
    %v1031 = vand.u32 2147483647, %v1003
    %v1032 = vand.u32 2147483647, %v1004
    %v1033 = vand.u32 2147483647, %v1005
    %v1034 = vand.u32 2147483647, %v1006
    %v1035 = vand.u32 2147483647, %v1007
    %v1036 = vand.u32 2147483647, %v1008
    %v1037 = vand.u32 2147483647, %v1009
    %v1038 = vand.u32 2147483647, %v1010
    %v1039 = vand.u32 2147483647, %v1011
    %v1040 = vand.u32 2147483647, %v1012
    %v1041 = vand.u32 2147483647, %v1013
    %v1042 = vand.u32 2147483647, %v1014
    %v1043 = vand.u32 2147483647, %v1015
    %v1044 = vand.u32 2147483647, %v1016
    %v1045 = vand.u32 2147483647, %v1017
    %v1046 = vand.u32 2147483647, %v1018
    %v1047 = vand.u32 2147483647, %v1019
    %v1048 = vand.u32 2147483647, %v1020
    %vm1049 = vcmask 1045504
    %v1050 = vsel %vm1049, %v1022, 0.0
    %v1051 = vadd.f32 %v1021, %v1050
    %v1052 = vadd.f32 %v1051, %v1023
    %v1053 = vsel %vm1049, %v1024, 0.0
    %v1054 = vadd.f32 %v1052, %v1053
    %v1055 = vadd.f32 %v1054, %v1025
    %v1056 = vsel %vm1049, %v1026, 0.0
    %v1057 = vadd.f32 %v1055, %v1056
    %v1058 = vadd.f32 %v1057, %v1027
    %v1059 = vsel %vm1049, %v1028, 0.0
    %v1060 = vadd.f32 %v1058, %v1059
    %v1061 = vadd.f32 %v1060, %v1029
    %v1062 = vsel %vm1049, %v1030, 0.0
    %v1063 = vadd.f32 %v1061, %v1062
    %v1064 = vadd.f32 %v1063, %v1031
    %v1065 = vsel %vm1049, %v1032, 0.0
    %v1066 = vadd.f32 %v1064, %v1065
    %v1067 = vadd.f32 %v1066, %v1033
    %v1068 = vsel %vm1049, %v1034, 0.0
    %v1069 = vadd.f32 %v1067, %v1068
    %v1070 = vadd.f32 %v1069, %v1035
    %v1071 = vsel %vm1049, %v1036, 0.0
    %v1072 = vadd.f32 %v1070, %v1071
    %v1073 = vadd.f32 %v1072, %v1037
    %v1074 = vsel %vm1049, %v1038, 0.0
    %v1075 = vadd.f32 %v1073, %v1074
    %v1076 = vadd.f32 %v1075, %v1039
    %v1077 = vsel %vm1049, %v1040, 0.0
    %v1078 = vadd.f32 %v1076, %v1077
    %v1079 = vadd.f32 %v1078, %v1041
    %v1080 = vsel %vm1049, %v1042, 0.0
    %v1081 = vadd.f32 %v1079, %v1080
    %v1082 = vadd.f32 %v1081, %v1043
    %v1083 = vsel %vm1049, %v1044, 0.0
    %v1084 = vadd.f32 %v1082, %v1083
    %v1085 = vadd.f32 %v1084, %v1045
    %v1086 = vsel %vm1049, %v1046, 0.0
    %v1087 = vadd.f32 %v1085, %v1086
    %v1088 = vadd.f32 %v1087, %v1047
    %v1089 = vsel %vm1049, %v1048, 0.0
    %v1090 = vadd.f32 %v1088, %v1089
    %1091 = vadd.xlane.f32.xlu0 %v1090
    %v1092 = vpop.xlane.xlu0 %1091
    %v1093 = vrot.slane %v1092, 4
    %v1094 = vadd.f32 %v1092, %v1093
    %v1095 = vrot.slane %v1094, 2
    %v1096 = vadd.f32 %v1094, %v1095
    %v1097 = vrot.slane %v1096, 1
    %v1098 = vadd.f32 %v1096, %v1097
    %s1099 = vtos %v1098
    %v1100 = vstv %s1099
    %1101 = vst [vmem:[%s3] sm:$0xff] %v1100
    // Predicated region
    $region10: #{laplacian_loss.2} parent=1 // pred_check
      _
    $region11: #{laplacian_loss.2} parent=1 // pred_check_branch
      %1103 = sbr.rel (0) target = $region13
    $region12: #{laplacian_loss.2} parent=1 // pred_region
      _
    $region13: #{laplacian_loss.2} parent=1 // pred_fallthru
      _
    // Predicated region
    $region14: #{laplacian_loss.2} parent=1 // pred_check
      _
    $region15: #{laplacian_loss.2} parent=1 // pred_check_branch
      %1105 = sbr.rel (0) target = $region17
    $region16: #{laplacian_loss.2} parent=1 // pred_region
      _
    $region17: #{laplacian_loss.2} parent=1 // pred_fallthru
      _

</llo_original>
